<compile_context>
chip_gen: v7x
topology: tpu7x:2x2x1
jax: 0.10.0
libtpu: 0.0.40
codegen_flags: <defaults>
</compile_context>

<pallas_src>
import functools
import math

import jax
import jax.numpy as jnp
from jax.experimental import pallas as pl
from jax.experimental.pallas import tpu as pltpu


# --------------------------------------------------------------------------
# Kernels
# --------------------------------------------------------------------------
def _emb_tile(tbl_ref, shape):
    """Interleaved sin/cos tile for the current grid step, shape (TB, TS, D)."""
    tb, ts, d = shape
    seq_start = pl.program_id(1) * ts                       # seq offset of this tile
    pos = jax.lax.broadcasted_iota(jnp.int32, (ts, d), 0) + seq_start
    pos = pos.astype(jnp.float32)
    tbl = tbl_ref[...]                                      # (2, D) f32, VMEM-resident
    inv_freq = tbl[0:1, :]                                  # (1, D): 10000**(-2k/D), paired lanes
    phase = tbl[1:2, :]                                     # (1, D): 0 (even lane) / pi/2 (odd)
    emb = jnp.sin(pos * inv_freq + phase)                   # even lane -> sin, odd -> cos
    return jnp.broadcast_to(emb[None], (tb, ts, d))         # replicate across batch sub-rows


def _sinpos_merge_kernel(tbl_ref, x_ref, o_ref, *, merge_mode):
    # x_ref / o_ref: (TB, TS, D) tile.
    emb = _emb_tile(tbl_ref, o_ref.shape)
    x = x_ref[...].astype(jnp.float32)
    if merge_mode == 'add':
        o_ref[...] = (x + emb).astype(o_ref.dtype)
    else:  # 'mul'
        o_ref[...] = (x * (emb + 1.0)).astype(o_ref.dtype)


def _sinpos_zero_kernel(tbl_ref, o_ref):
    # 'zero' mode: output is just the (1, TS, D) embedding tile; no input read.
    o_ref[...] = _emb_tile(tbl_ref, o_ref.shape).astype(o_ref.dtype)


# --------------------------------------------------------------------------
# Wrapper
# --------------------------------------------------------------------------
def _make_freq_phase_table(output_dim):
    """(2, D) f32 table: row 0 = per-lane inv_freq, row 1 = per-lane phase."""
    half = jnp.arange(output_dim // 2, dtype=jnp.float32)
    inv_freq_half = jnp.power(10000.0, -2.0 * half / output_dim)      # (D/2,)
    inv_freq = jnp.repeat(inv_freq_half, 2)                           # lanes 2k, 2k+1 share f_k
    phase = jnp.tile(jnp.array([0.0, math.pi / 2], dtype=jnp.float32),
                     output_dim // 2)                                 # cos(x) = sin(x + pi/2)
    return jnp.stack([inv_freq, phase], axis=0)                       # (2, D)


def _choose_tiles(batch, seq_len, d, itemsize):
    """Pick (TB, TS) so one (TB, TS, D) block is ~<=2 MiB and layout-legal."""
    target_bytes = 2 << 20
    rows = max(1, target_bytes // max(1, d * itemsize))     # total (batch*seq) rows per block
    if seq_len <= rows:
        ts = seq_len                                        # full seq dim: always legal
        tb = max(1, min(batch, rows // max(1, seq_len)))    # pack several batch rows per step
    else:
        ts = max(8, (min(rows, seq_len) // 8) * 8)          # 8-aligned sublane rule
        tb = 1
    return tb, ts


def sinusoidal_position_embedding(inputs, output_dim, merge_mode='add'):
    """Pallas equivalent of SinusoidalPositionEmbedding.forward."""
    b, s, d = inputs.shape
    assert d == output_dim, "inputs last dim must equal output_dim"
    assert d % 2 == 0, "output_dim must be even"
    if merge_mode not in ('add', 'mul', 'zero'):
        raise ValueError(f"unknown merge_mode: {merge_mode}")

    table = _make_freq_phase_table(d)
    tbl_spec = pl.BlockSpec((2, d), lambda i, j: (0, 0))

    if merge_mode == 'zero':
        # PyTorch returns the raw (1, N, D) float32 embedding table in this mode.
        tb, ts = _choose_tiles(1, s, d, 4)
        grid = (1, pl.cdiv(s, ts))
        out_shape = jax.ShapeDtypeStruct((1, s, d), jnp.float32)
        out_spec = pl.BlockSpec((1, ts, d), lambda i, j: (0, j, 0))
        kernel = _sinpos_zero_kernel
        in_specs = [tbl_spec]
        args = (table,)
        bytes_accessed = s * d * 4                           # output only
        flops = 2 * s * d
        transcendentals = s * d
    else:
        itemsize = jnp.dtype(inputs.dtype).itemsize
        tb, ts = _choose_tiles(b, s, d, itemsize)
        grid = (pl.cdiv(b, tb), pl.cdiv(s, ts))
        out_shape = jax.ShapeDtypeStruct((b, s, d), inputs.dtype)
        blk_spec = pl.BlockSpec((tb, ts, d), lambda i, j: (i, j, 0))
        kernel = functools.partial(_sinpos_merge_kernel, merge_mode=merge_mode)
        in_specs = [tbl_spec, blk_spec]
        out_spec = blk_spec
        args = (table, inputs)
        bytes_accessed = 2 * b * s * d * itemsize            # in + out
        flops = 3 * b * s * d
        transcendentals = b * s * d

    return pl.pallas_call(
        kernel,
        out_shape=out_shape,
        grid_spec=pltpu.PrefetchScalarGridSpec(
            num_scalar_prefetch=0,
            grid=grid,
            in_specs=in_specs,
            out_specs=out_spec,
        ),
        compiler_params=pltpu.CompilerParams(
            dimension_semantics=("parallel", "parallel")),
        cost_estimate=pl.CostEstimate(
            flops=flops,
            transcendentals=transcendentals,
            bytes_accessed=bytes_accessed),
    )(*args)


# --------------------------------------------------------------------------
# Pure-JAX reference (mirrors the PyTorch forward exactly)
# --------------------------------------------------------------------------
def _reference(inputs, output_dim, merge_mode='add'):
    _, seq_len, _ = inputs.shape
    position_ids = jnp.arange(seq_len, dtype=jnp.float32)[None]          # (1, N)
    indices = jnp.arange(output_dim // 2, dtype=jnp.float32)
    indices = jnp.power(10000.0, -2.0 * indices / output_dim)            # (D/2,)
    emb = jnp.einsum('bn,d->bnd', position_ids, indices)                 # (1, N, D/2)
    emb = jnp.stack([jnp.sin(emb), jnp.cos(emb)], axis=-1)               # (1, N, D/2, 2)
    emb = jnp.reshape(emb, (-1, seq_len, output_dim))                    # (1, N, D)
    if merge_mode == 'add':
        return inputs + emb.astype(inputs.dtype)
    elif merge_mode == 'mul':
        return inputs * (emb + 1.0).astype(inputs.dtype)
    elif merge_mode == 'zero':
        return emb                                                       # (1, N, D) f32


if __name__ == "__main__":
    batch, seq, hidden = 2, 8, 32
    key = jax.random.PRNGKey(0)
    x = jax.random.normal(key, (batch, seq, hidden), dtype=jnp.float32)

    for mode in ('add', 'mul', 'zero'):
        out = sinusoidal_position_embedding(x, output_dim=hidden, merge_mode=mode)
        out = jax.block_until_ready(out)
        ref = _reference(x, output_dim=hidden, merge_mode=mode)
        assert out.shape == ref.shape, f"shape mismatch in mode={mode}"
        assert out.dtype == ref.dtype, f"dtype mismatch in mode={mode}"
        assert jnp.allclose(out, ref, atol=1e-5, rtol=1e-5), f"mismatch in mode={mode}"

    print("KERNEL_OK")
</pallas_src>

<mosaic_0001>
module attributes {stable_mosaic.version = 11 : i64} {
  func.func @_sinpos_merge_kernel(%arg0: i32, %arg1: i32, %arg2: memref<2x32xf32, #tpu.memory_space<vmem>>, %arg3: memref<2x8x32xf32, #tpu.memory_space<vmem>>, %arg4: memref<2x8x32xf32, #tpu.memory_space<vmem>>) attributes {dimension_semantics = [#tpu.dimension_semantics<parallel>, #tpu.dimension_semantics<parallel>], iteration_bounds = array<i64: 1, 1>, scalar_prefetch = 0 : i64, scratch_operands = 0 : i64, tpu.core_type = #tpu.core_type<tc>, window_params = [{pipeline_mode = #tpu.pipeline_mode<synchronous>, transform_indices = @transform_0, window_bounds = array<i64: 2, 32>}, {transform_indices = @transform_1, window_bounds = array<i64: 2, 8, 32>}, {transform_indices = @transform_2, window_bounds = array<i64: 2, 8, 32>}]} {
    %c8_i32 = arith.constant 8 : i32
    %0 = arith.muli %arg1, %c8_i32 : i32
    %1 = tpu.iota {dimensions = array<i32: 0>} : vector<8x32xi32>
    %2 = vector.broadcast %0 : i32 to vector<8x32xi32>
    %3 = arith.addi %1, %2 : vector<8x32xi32>
    %4 = arith.sitofp %3 : vector<8x32xi32> to vector<8x32xf32>
    %c0 = arith.constant 0 : index
    %c0_0 = arith.constant 0 : index
    %5 = vector.load %arg2[%c0, %c0_0] : memref<2x32xf32, #tpu.memory_space<vmem>>, vector<2x32xf32>
    %6 = vector.extract_strided_slice %5 {offsets = [0, 0], sizes = [1, 32], strides = [1, 1]} : vector<2x32xf32> to vector<1x32xf32>
    %7 = vector.extract_strided_slice %5 {offsets = [1, 0], sizes = [1, 32], strides = [1, 1]} : vector<2x32xf32> to vector<1x32xf32>
    %8 = vector.broadcast %6 : vector<1x32xf32> to vector<8x32xf32>
    %9 = arith.mulf %4, %8 : vector<8x32xf32>
    %10 = vector.broadcast %7 : vector<1x32xf32> to vector<8x32xf32>
    %11 = arith.addf %9, %10 : vector<8x32xf32>
    %12 = math.sin %11 : vector<8x32xf32>
    %13 = vector.shape_cast %12 : vector<8x32xf32> to vector<1x8x32xf32>
    %14 = vector.shape_cast %13 : vector<1x8x32xf32> to vector<1x8x32xf32>
    %15 = vector.broadcast %14 : vector<1x8x32xf32> to vector<2x8x32xf32>
    %c0_1 = arith.constant 0 : index
    %c0_2 = arith.constant 0 : index
    %c0_3 = arith.constant 0 : index
    %16 = vector.load %arg3[%c0_1, %c0_2, %c0_3] : memref<2x8x32xf32, #tpu.memory_space<vmem>>, vector<2x8x32xf32>
    %17 = arith.addf %16, %15 : vector<2x8x32xf32>
    %c0_4 = arith.constant 0 : index
    %c0_5 = arith.constant 0 : index
    %c0_6 = arith.constant 0 : index
    %18 = vector.load %arg4[%c0_4, %c0_5, %c0_6] : memref<2x8x32xf32, #tpu.memory_space<vmem>>, vector<2x8x32xf32>
    tpu.vector_store %arg4[%c0_4, %c0_5, %c0_6], %17 {strides = array<i32>} : memref<2x8x32xf32, #tpu.memory_space<vmem>>, vector<2x8x32xf32>,
    return
  }
  func.func @transform_0(%arg0: i32, %arg1: i32) -> (i32, i32) {
    %c0_i32 = arith.constant 0 : i32
    %c0_i32_0 = arith.constant 0 : i32
    %c0_i32_1 = arith.constant 0 : i32
    return %c0_i32, %c0_i32_0 : i32, i32
  }
  func.func @transform_1(%arg0: i32, %arg1: i32) -> (i32, i32, i32) {
    %c0_i32 = arith.constant 0 : i32
    %c0_i32_0 = arith.constant 0 : i32
    return %arg0, %arg1, %c0_i32 : i32, i32, i32
  }
  func.func @transform_2(%arg0: i32, %arg1: i32) -> (i32, i32, i32) {
    %c0_i32 = arith.constant 0 : i32
    %c0_i32_0 = arith.constant 0 : i32
    return %arg0, %arg1, %c0_i32 : i32, i32, i32
  }
}

</mosaic_0001>

<llo_original>
// kernel: tpu_custom_call.1
$region0: #{tpu_custom_call.1}
  #allocation0 [shape = 'u32[]', space=smem, size = 0x4, offset = 0x4, fixed_abs, tag = 'smem constant byte address 0x4 - core index']
  #allocation1 [shape = 'u32[144,128]{1,0:T(1,128)}', space=vmem, size = 0x12000, scoped, tag = 'internal scratch']
  %s0 = inlined_call_operand.hbm [shape: f32[2,32], index: 0, kind: input, shape index: {}]
  %s1 = inlined_call_operand.hbm [shape: f32[2,8,32], index: 1, kind: input, shape index: {}]
  %s2 = inlined_call_operand.hbm [shape: f32[2,8,32], index: 2, kind: output, shape index: {}]
  %s3 = sld [smem:[#allocation0]]
  $region26: #{tpu_custom_call.1} parent=0
    _
  %s5 = ssub.s32 1, %s3
  %s6 = scalar_select 0, %s5, %s3
  $region1: #{tpu_custom_call.1} parent=0
    #allocation2 [shape = 'u8[1024]{0}', space=vmem, size = 0x400, scoped, tag = 'input window, operand 0, single buffered']
    #allocation3 [shape = 's32[1]{0}', space=sflag, size = 0x4, scoped, tag = 'scoped memory for tpu_custom_call.1']
    #allocation4 [shape = 's32[1]{0}', space=sflag, size = 0x4, scoped, tag = 'scoped memory for tpu_custom_call.1']
    #allocation5 [shape = 'u8[8192]{0}', space=vmem, size = 0x2000, scoped, tag = 'input window, operand 1, single buffered']
    #allocation6 [shape = 's32[1]{0}', space=sflag, size = 0x4, scoped, tag = 'scoped memory for tpu_custom_call.1']
    #allocation7 [shape = 'u8[8192]{0}', space=vmem, size = 0x2000, scoped, tag = 'output window, operand 0, single buffered']
    %7 = vsyncpa [#allocation3], 0
    %8 = vsyncpa [#allocation6], 0
    %9 = vsyncpa [#allocation4], 0
    // Predicated region
    $region2: #{tpu_custom_call.1} parent=1 // pred_check
      _
    $region3: #{tpu_custom_call.1} parent=1 // pred_check_branch
      %11 = sbr.rel (0) target = $region5
    $region4: #{tpu_custom_call.1} parent=1 // pred_region
      %s13 = ssub.s32 32, 32
      %14 = vsyncadd [#allocation3], %s13
      %s16 = sshll.u32 [#allocation2], 4
      %s17 = int_to_ptr.vmem [resolvable:$true] %s16
      %19 = dma.hbm_to_vmem [thread:$0]  %s0, 32, %s17, [#allocation3]
    $region5: #{tpu_custom_call.1} parent=1 // pred_fallthru
      _
    // Predicated region
    $region6: #{tpu_custom_call.1} parent=1 // pred_check
      _
    $region7: #{tpu_custom_call.1} parent=1 // pred_check_branch
      %21 = sbr.rel (0) target = $region9
    $region8: #{tpu_custom_call.1} parent=1 // pred_region
      %s23 = ssub.s32 256, 256
      %24 = vsyncadd [#allocation6], %s23
      %s25 = sshll.u32 [#allocation5], 4
      %s26 = int_to_ptr.vmem [resolvable:$true] %s25
      %31 = dma.hbm_to_vmem [thread:$0]  %s1, 256, %s26, [#allocation6], 128, 128, 8
    $region9: #{tpu_custom_call.1} parent=1 // pred_fallthru
      _
    // Predicated region
    $region10: #{tpu_custom_call.1} parent=1 // pred_check
      _
    $region11: #{tpu_custom_call.1} parent=1 // pred_check_branch
      %33 = sbr.rel (0) target = $region13
    $region12: #{tpu_custom_call.1} parent=1 // pred_region
      %34 = dma.done [#allocation3], 32
    $region13: #{tpu_custom_call.1} parent=1 // pred_fallthru
      _
    // Predicated region
    $region14: #{tpu_custom_call.1} parent=1 // pred_check
      _
    $region15: #{tpu_custom_call.1} parent=1 // pred_check_branch
      %36 = sbr.rel (0) target = $region17
    $region16: #{tpu_custom_call.1} parent=1 // pred_region
      %37 = dma.done [#allocation6], 256
    $region17: #{tpu_custom_call.1} parent=1 // pred_fallthru
      _
    %s38 = smul.u32 0, 8
    %v39 = vlaneseq
    %v40 = vshrl.u32 %v39, 7
    %v41 = vstv %s38
    %v42 = vadd.s32 %v40, %v41
    %v43 = vcvt.s32.f32 %v42
    %v44 = vld [vmem:[#allocation2] sm:$0x3]
    %v45 = vlaneseq
    %v46 = vshrl.u32 %v45, 7
    %v47 = vsub.s32 0, %v46
    %v48 = vrot.slane %v44, %v47
    %v49 = vmul.f32 %v43, %v48
    %v50 = vlaneseq
    %v51 = vshrl.u32 %v50, 7
    %v52 = vsub.s32 1, %v51
    %v53 = vrot.slane %v44, %v52
    %v54 = vadd.f32 %v49, %v53
    %v55 = vand.u32 2147483647, %v54
    %vm56 = vcmp.le.f32.partialorder %v55, 0.7853982
    %vm57 = vcmp.lt.s32.totalorder %v54, 0
    %v58 = vand.u32 %v54, 2139095040
    %v59 = vshrl.u32 %v58, 23
    %v60 = vsub.s32 %v59, 127
    %v61 = vand.u32 2147483647, %v54
    %v62 = vand.u32 %v61, 8388607
    %v63 = vor.u32 %v62, 8388608
    %v64 = vsub.s32 0, %v63
    %v65 = vadd.s32 %v60, 1
    %vm66 = vcmp.gt.s32.totalorder %v65, 0
    %v67 = vsel %vm66, %v65, 0
    %v68 = vshrl.u32 %v67, 5
    %v69 = vand.u32 %v67, 31
    %v70 = vsub.s32 32, %v69
    %v71 = vshrl.u32 683565275, %v70
    %v72 = vshll.u32 683565275, %v69
    %v73 = vshrl.u32 2475754826, %v70
    %v74 = vor.u32 %v72, %v73
    %v75 = vshll.u32 2475754826, %v69
    %v76 = vshrl.u32 2131351028, %v70
    %v77 = vor.u32 %v75, %v76
    %v78 = vshll.u32 2131351028, %v69
    %v79 = vshrl.u32 2102212464, %v70
    %v80 = vor.u32 %v78, %v79
    %v81 = vshll.u32 2102212464, %v69
    %v82 = vshrl.u32 920167782, %v70
    %v83 = vor.u32 %v81, %v82
    %v84 = vshll.u32 920167782, %v69
    %v85 = vshrl.u32 1326507024, %v70
    %v86 = vor.u32 %v84, %v85
    %vm87 = vcmp.lt.s32.totalorder %v68, 1
    %vm88 = vcmp.lt.s32.totalorder %v68, 2
    %vm89 = vcmp.lt.s32.totalorder %v68, 3
    %vm90 = vcmp.lt.s32.totalorder %v68, 4
    %v91 = vsel %vm87, %v71, %v74
    %v92 = vsel %vm90, %v80, 2102212464
    %v93 = vsel %vm89, %v77, %v92
    %v94 = vsel %vm88, %v91, %v93
    %v95 = vsel %vm87, %v74, %v77
    %v96 = vsel %vm90, %v83, 920167782
    %v97 = vsel %vm89, %v80, %v96
    %v98 = vsel %vm88, %v95, %v97
    %v99 = vsel %vm87, %v77, %v80
    %v100 = vsel %vm90, %v86, 1326507024
    %v101 = vsel %vm89, %v83, %v100
    %v102 = vsel %vm88, %v99, %v101
    %v103 = vshll.u32 %v63, 8
    %v104 = vmul.u32.u64.compose %v103, %v102
    %v105 = vextract.low.u32 %v104
    %v106 = vextract.high.u32 %v104
    %v107 = vmul.u32.u64.compose %v103, %v98
    %v108 = vextract.low.u32 %v107
    %v109 = vextract.high.u32 %v107
    %v110 = vmul.u32 %v103, %v94
    %v111 = vadd.s32 %v106, %v108
    %vm112 = vc.u32 %v106, %v108
    %v113 = vadd.s32 %v109, 1
    %v114 = vsel %vm112, %v113, %v109
    %v115 = vadd.s32 %v110, %v114
    %v116 = vadd.s32 %v115, 536870912
    %v117 = vshrl.u32 %v116, 30
    %v118 = vshll.u32 %v117, 30
    %v119 = vsub.s32 %v115, %v118
    %vm120 = vcmp.lt.s32.totalorder %v119, 0
    %v121 = vsub.s32 0, %v119
    %v122 = vsel %vm120, %v121, %v119
    %v123 = vclz %v122
    %v124 = vsub.s32 %v123, 2
    %vm125 = vcmp.gt.s32.totalorder 0, %v124
    %v126 = vsel %vm125, 0, %v124
    %v127 = vsub.s32 32, %v126
    %v128 = vshll.u32 %v119, %v126
    %v129 = vshrl.u32 %v111, %v127
    %v130 = vor.u32 %v128, %v129
    %v131 = vsub.s32 4294967266, %v126
    %v132 = vadd.s32 %v131, 127
    %v133 = vshll.u32 %v132, 23
    %v134 = vor.u32 4788187, %v133
    %v135 = vand.u32 2147483647, %v134
    %v137 = vcvt.s32.f32 %v130
    %v138 = vmul.f32 %v137, %v135
    %v139 = vxor.u32 %v138, 2147483648
    %v140 = vsel %vm57, %v139, %v138
    %v141 = vsub.s32 4, %v117
    %v142 = vsel %vm57, %v141, %v117
    %v143 = vsel %vm56, %v54, %v140
    %v144 = vsel %vm56, 0, %v142
    %v145 = vcosq.f32.pop %v143
    %v146 = vsinq.f32.pop %v143
    %vm147 = vweird.f32 %v54
    %v148 = vadd.s32 %v144, 3
    %v149 = vand.u32 %v148, 3
    %vm150 = vcmp.lt.s32.totalorder %v149, 2
    %vm151 = vcmp.eq.s32.totalorder %v149, 0
    %v152 = vxor.u32 %v146, 2147483648
    %v153 = vsel %vm151, %v145, %v152
    %vm154 = vcmp.eq.s32.totalorder %v149, 2
    %v155 = vxor.u32 %v145, 2147483648
    %v156 = vsel %vm154, %v155, %v146
    %v157 = vsel %vm150, %v153, %v156
    %v158 = vsel %vm147, nan, %v157
    %v159 = vld [vmem:[#allocation5] sm:$0xff]
    %v160 = vld [vmem:[#allocation5 + $0x8] sm:$0xff]
    %v161 = vadd.f32 %v159, %v158
    %v162 = vadd.f32 %v160, %v158
    %vm163 = vcmask 261120
    %164 = vst.msk [vmem:[#allocation7] sm:$0xff] %vm163, %v161
    %165 = vst.msk [vmem:[#allocation7 + $0x8] sm:$0xff] %vm163, %v162
    // Predicated region
    $region18: #{tpu_custom_call.1} parent=1 // pred_check
      _
    $region19: #{tpu_custom_call.1} parent=1 // pred_check_branch
      %167 = sbr.rel (0) target = $region21
    $region20: #{tpu_custom_call.1} parent=1 // pred_region
      %s169 = ssub.s32 256, 256
      %170 = vsyncadd [#allocation4], %s169
      %s171 = sshll.u32 [#allocation7], 4
      %s172 = int_to_ptr.vmem [resolvable:$true] %s171
      %177 = dma.vmem_to_hbm [thread:$0]  %s172, 256, %s2, [#allocation4], 128, 128, 8
    $region21: #{tpu_custom_call.1} parent=1 // pred_fallthru
      _
    // Predicated region
    $region22: #{tpu_custom_call.1} parent=1 // pred_check
      _
    $region23: #{tpu_custom_call.1} parent=1 // pred_check_branch
      %179 = sbr.rel (0) target = $region25
    $region24: #{tpu_custom_call.1} parent=1 // pred_region
      %180 = dma.done [#allocation4], 256
    $region25: #{tpu_custom_call.1} parent=1 // pred_fallthru
      _
    %181 = vsyncpa [#allocation3], 1
    %182 = vsyncpa [#allocation6], 1
    %183 = vsyncpa [#allocation4], 1

</llo_original>
